<compile_context>
chip_gen: v7x
topology: tpu7x:2x2x1
jax: 0.10.0
libtpu: 0.0.40
codegen_flags: <defaults>
</compile_context>

<pallas_src>
import functools

import jax
import jax.numpy as jnp
from jax import lax
from jax.experimental import pallas as pl
from jax.experimental.pallas import tpu as pltpu

EPS = 1e-5  # nn.InstanceNorm2d default eps (affine=False, no running stats)


# ------------------------- chip query (defensive) -------------------------

def _chip_info():
    """Returns (vmem_capacity_bytes, mxu_rows) with conservative fallbacks."""
    vmem_cap = 64 * 1024 * 1024          # v7x per-core VMEM: safe lower bound everywhere
    try:
        vmem_cap = int(pltpu.get_tpu_info().vmem_capacity_bytes)
    except Exception:
        pass
    mxu_rows = 256                        # v6e/v7x MXU is 256x256
    try:
        kind = jax.devices()[0].device_kind.lower()
        if any(g in kind for g in ("v2", "v3", "v4", "v5")):
            mxu_rows = 128                # v5e and older: 128x128 MXU
    except Exception:
        pass
    return vmem_cap, mxu_rows


# ------------------------- Pallas kernel (shared by both stages) -------------------------

def _conv_in_kernel(x_ref, w_ref, mask_ref, *rest, wp, lo, inv_n, apply_relu):
    """Fused (3x3 conv -> instance norm -> ReLU | +residual) for one (batch, C_out tile).

    x_ref   : (C_in, Qp)        reflect-padded, row-flattened image (+tail lanes)
    w_ref   : (C_out_t, 9*C_in) K-stacked weights, K index = (3*ky+kx)*C_in + ci
    mask_ref: (1, lo) f32       1.0 on valid spatial lanes, 0.0 on junk/pad lanes
    res_ref : (C_out_t, lo)     (residual stage only) f32 residual, already lane-aligned
    out_ref : (C_out_t, lo)
    """
    if apply_relu:
        (out_ref,) = rest
        res_ref = None
    else:
        res_ref, out_ref = rest

    xv = x_ref[...]                                    # one VMEM load of the padded slab
    # Stack the 9 statically lane-shifted tap views along K -> single MXU pass, K=9*C_in.
    taps = []
    for k in range(9):
        off = (k // 3) * wp + (k % 3)                  # lane shift = ky*(W+2) + kx
        taps.append(xv[:, off:off + lo])
    xs = jnp.concatenate(taps, axis=0)                 # (9*C_in, lo)
    acc = jnp.dot(w_ref[...], xs,
                  preferred_element_type=jnp.float32)  # (C_out_t, lo), f32

    # Instance-norm statistics (two-pass centered variance; mask is 0/1 so mask^2==mask).
    mask = mask_ref[...]
    mean = jnp.sum(acc * mask, axis=1, keepdims=True) * inv_n
    centered = acc - mean
    cm = centered * mask
    var = jnp.sum(cm * cm, axis=1, keepdims=True) * inv_n   # biased variance (PyTorch IN)
    y = centered * lax.rsqrt(var + EPS)                      # rsqrt -> EUP slot

    if apply_relu:
        y = jnp.maximum(y, 0.0)
    else:
        y = y + res_ref[...].astype(jnp.float32)             # residual add in f32
    out_ref[...] = y.astype(out_ref.dtype)


# ------------------------- pallas_call wrapper for one stage -------------------------

def _run_stage(xpf, w_mat, mask, residual, *, wp, lo_pad, inv_n, apply_relu, out_dtype):
    N, c_in, qp = xpf.shape
    c_out, k9 = w_mat.shape
    in_b = jnp.dtype(xpf.dtype).itemsize
    out_b = jnp.dtype(out_dtype).itemsize
    vmem_cap, mxu_rows = _chip_info()

    def need_bytes(ct):
        # Honest per-grid-step working set: double-buffered DMAs + in-kernel copies.
        return (2 * c_in * qp * in_b                           # padded image slab
                + 2 * ct * k9 * in_b                           # weight tile
                + 2 * lo_pad * 4                               # valid-lane mask
                + 2 * ct * lo_pad * out_b                      # output tile
                + (2 * ct * lo_pad * 4 if residual is not None else 0)   # residual tile
                + k9 * lo_pad * in_b                           # K-stacked operand copy
                + 2 * ct * lo_pad * 4)                         # f32 acc + normalized temp

    # C_out tiling: instance norm is per-channel, so tiles need no cross-tile statistics.
    # Prefer a tile that fills the MXU rows but stays well under this chip's VMEM.
    cands = []
    if mxu_rows >= 256 and c_out % 256 == 0:
        cands.append(256)
    if c_out % 128 == 0:
        cands.append(128)
    cands.append(c_out)
    ct = cands[-1]
    for c in cands:
        if need_bytes(c) <= 0.55 * vmem_cap:
            ct = c
            break
    # TODO(synk): spatial (H-block) tiling with sum/sumsq accumulators when even the
    #             smallest channel tile overflows VMEM (very large H*W, mainly v7x).

    # Avoid a degenerate (1, 1) grid at batch 1: v7x has 2 TensorCores and the pipeline
    # needs >=2 programs to overlap anything.
    if N == 1 and c_out // ct == 1 and ct % 16 == 0:
        ct //= 2

    grid = (N, c_out // ct)
    kernel = functools.partial(_conv_in_kernel, wp=wp, lo=lo_pad, inv_n=inv_n,
                               apply_relu=apply_relu)

    in_specs = [
        pl.BlockSpec((None, c_in, qp), lambda b, j: (b, 0, 0)),     # padded image (all C_in)
        pl.BlockSpec((ct, k9), lambda b, j: (j, 0)),                # K-stacked weight tile
        pl.BlockSpec((1, lo_pad), lambda b, j: (0, 0)),             # valid-lane mask
    ]
    args = [xpf, w_mat, mask]
    if residual is not None:
        in_specs.append(pl.BlockSpec((None, ct, lo_pad), lambda b, j: (b, j, 0)))
        args.append(residual)

    # Per-chip VMEM limit: never exceed 75% of physical VMEM (96 MiB is illegal on v7x),
    # always set a computed value so v5e's 16 MiB default scoped limit is never a cliff.
    vmem_limit = int(min(0.75 * vmem_cap, max(1.5 * need_bytes(ct), 32 * 1024 * 1024)))

    return pl.pallas_call(
        kernel,
        out_shape=jax.ShapeDtypeStruct((N, c_out, lo_pad), out_dtype),
        grid_spec=pltpu.PrefetchScalarGridSpec(
            num_scalar_prefetch=0,
            grid=grid,
            in_specs=in_specs,
            out_specs=pl.BlockSpec((None, ct, lo_pad), lambda b, j: (b, j, 0)),
        ),
        compiler_params=pltpu.CompilerParams(
            dimension_semantics=("parallel", "parallel"),
            vmem_limit_bytes=vmem_limit,
        ),
    )(*args)


# ------------------------- JAX glue (pure indexing, no transposes) -------------------------

def _round_up(x, m):
    return ((x + m - 1) // m) * m


def _pad_reflect_flatten(img, H, W, lo_pad):
    """(N, C, H, W) -> (N, C, lo_pad + 2*(W+2) + 2): reflect-pad, row-flatten and append
    zero tail lanes so every lane-shifted tap slice (shift <= 2*(W+2)+2, length lo_pad)
    is a static in-bounds slice inside the kernel."""
    wp = W + 2
    p = jnp.pad(img, ((0, 0), (0, 0), (1, 1), (1, 1)), mode="reflect")
    flat = p.reshape(img.shape[0], img.shape[1], (H + 2) * wp)
    tail = (lo_pad + 2 * wp + 2) - (H + 2) * wp
    return jnp.pad(flat, ((0, 0), (0, 0), (0, tail)))


def resnet_forward(x, w1, w2, *, compute_dtype=jnp.bfloat16, out_dtype=jnp.float32):
    """ResNet block: x + IN(conv3x3(reflpad(relu(IN(conv3x3(reflpad(x)))))))  (NCHW)."""
    N, C, H, W = x.shape
    wp = W + 2
    lo_valid = H * wp
    lo_pad = _round_up(lo_valid, 128)          # lane-dense stores: last dim multiple of 128
    inv_n = 1.0 / float(H * W)

    # (C_out, C_in, 3, 3) -> (C_out, 9*C_in), K index (3*ky+kx)*C_in + ci, matching the
    # in-kernel K-stacked operand.  Tiny; constant-folded under jit.
    w1m = jnp.transpose(w1, (0, 2, 3, 1)).reshape(C, 9 * C).astype(compute_dtype)
    w2m = jnp.transpose(w2, (0, 2, 3, 1)).reshape(C, 9 * C).astype(compute_dtype)

    lane = jnp.arange(lo_pad, dtype=jnp.int32)
    valid = (lane % wp < W) & (lane < lo_valid)
    mask = valid.astype(jnp.float32).reshape(1, lo_pad)

    x_pad = _pad_reflect_flatten(x, H, W, lo_pad).astype(compute_dtype)

    # Residual pre-aligned in the wrapper to (N, C, lo_pad) f32 (one cheap XLA pad), so the
    # kernel adds it directly with no unaligned lane re-slice per grid step.
    res = jnp.pad(x.astype(jnp.float32), ((0, 0), (0, 0), (0, 0), (0, wp - W)))
    res = res.reshape(N, C, lo_valid)
    res = jnp.pad(res, ((0, 0), (0, 0), (0, lo_pad - lo_valid)))

    # Stage 1: conv3x3 -> instance norm -> ReLU (one fused kernel).
    h = _run_stage(x_pad, w1m, mask, None, wp=wp, lo_pad=lo_pad, inv_n=inv_n,
                   apply_relu=True, out_dtype=compute_dtype)

    # Stage 1 -> 2 handoff: slice valid lanes, reflect-pad, re-flatten (index glue on ~1x
    # the activation; stays NCHW order throughout).
    # TODO(synk): write stage-1 output straight into a pre-padded slab via
    #             input_output_aliases and patch only the reflected border.
    h_img = h[:, :, :lo_valid].reshape(N, C, H, wp)[:, :, :, :W]
    h_pad = _pad_reflect_flatten(h_img, H, W, lo_pad)

    # Stage 2: conv3x3 -> instance norm -> (+x) (residual added in f32 in-kernel).
    y = _run_stage(h_pad, w2m, mask, res, wp=wp, lo_pad=lo_pad, inv_n=inv_n,
                   apply_relu=False, out_dtype=out_dtype)
    return y[:, :, :lo_valid].reshape(N, C, H, wp)[:, :, :, :W]


# ------------------------- pure-JAX reference (for sanity check) -------------------------

def _reference(x, w1, w2):
    def conv3x3_reflect(inp, w):
        xp = jnp.pad(inp, ((0, 0), (0, 0), (1, 1), (1, 1)), mode="reflect")
        return lax.conv_general_dilated(
            xp, w, window_strides=(1, 1), padding="VALID",
            dimension_numbers=("NCHW", "OIHW", "NCHW"))

    def inorm(y):
        m = y.mean(axis=(2, 3), keepdims=True)
        v = ((y - m) ** 2).mean(axis=(2, 3), keepdims=True)
        return (y - m) * lax.rsqrt(v + EPS)

    h = jnp.maximum(inorm(conv3x3_reflect(x, w1)), 0.0)
    return x + inorm(conv3x3_reflect(h, w2))


if __name__ == "__main__":
    key = jax.random.PRNGKey(0)
    kx, k1, k2 = jax.random.split(key, 3)

    N, C, H, W = 2, 4, 16, 16
    x = jax.random.normal(kx, (N, C, H, W), dtype=jnp.float32)
    # Conv2d(C, C, 3, bias=False) weights, deterministic kaiming-uniform-like scale.
    bound = 1.0 / (C * 9) ** 0.5
    w1 = jax.random.uniform(k1, (C, C, 3, 3), jnp.float32, -bound, bound)
    w2 = jax.random.uniform(k2, (C, C, 3, 3), jnp.float32, -bound, bound)

    ref = jax.block_until_ready(_reference(x, w1, w2))

    # Exact-arithmetic path (f32 MXU inputs) -- strict correctness gate.
    fwd_f32 = jax.jit(functools.partial(resnet_forward, compute_dtype=jnp.float32))
    out_f32 = jax.block_until_ready(fwd_f32(x, w1, w2))
    assert out_f32.shape == (N, C, H, W)
    assert jnp.allclose(out_f32, ref, atol=1e-4, rtol=1e-4), \
        float(jnp.max(jnp.abs(out_f32 - ref)))

    # Default fast path (bf16 MXU inputs, f32 accumulation and IN statistics).
    out_bf16 = jax.block_until_ready(jax.jit(resnet_forward)(x, w1, w2))
    assert out_bf16.shape == (N, C, H, W)
    assert jnp.allclose(out_bf16, ref, atol=1e-1, rtol=1e-1), \
        float(jnp.max(jnp.abs(out_bf16 - ref)))

    print("KERNEL_OK")
</pallas_src>

<mosaic_0001>
module attributes {stable_mosaic.version = 11 : i64} {
  func.func @_conv_in_kernel(%arg0: i32, %arg1: i32, %arg2: memref<1x4x422xf32, #tpu.memory_space<vmem>>, %arg3: memref<4x36xf32, #tpu.memory_space<vmem>>, %arg4: memref<1x384xf32, #tpu.memory_space<vmem>>, %arg5: memref<1x4x384xf32, #tpu.memory_space<vmem>>) attributes {dimension_semantics = [#tpu.dimension_semantics<parallel>, #tpu.dimension_semantics<parallel>], iteration_bounds = array<i64: 2, 1>, scalar_prefetch = 0 : i64, scratch_operands = 0 : i64, tpu.core_type = #tpu.core_type<tc>, window_params = [{transform_indices = @transform_0, window_bounds = array<i64: 1, 4, 422>}, {transform_indices = @transform_1, window_bounds = array<i64: 4, 36>}, {pipeline_mode = #tpu.pipeline_mode<synchronous>, transform_indices = @transform_2, window_bounds = array<i64: 1, 384>}, {transform_indices = @transform_3, window_bounds = array<i64: 1, 4, 384>}]} {
    %c0 = arith.constant 0 : index
    %c0_0 = arith.constant 0 : index
    %c0_1 = arith.constant 0 : index
    %0 = vector.load %arg2[%c0, %c0_0, %c0_1] : memref<1x4x422xf32, #tpu.memory_space<vmem>>, vector<1x4x422xf32>
    %1 = vector.shape_cast %0 : vector<1x4x422xf32> to vector<4x422xf32>
    %2 = vector.extract_strided_slice %1 {offsets = [0, 0], sizes = [4, 384], strides = [1, 1]} : vector<4x422xf32> to vector<4x384xf32>
    %3 = vector.extract_strided_slice %1 {offsets = [0, 1], sizes = [4, 384], strides = [1, 1]} : vector<4x422xf32> to vector<4x384xf32>
    %4 = vector.extract_strided_slice %1 {offsets = [0, 2], sizes = [4, 384], strides = [1, 1]} : vector<4x422xf32> to vector<4x384xf32>
    %5 = vector.extract_strided_slice %1 {offsets = [0, 18], sizes = [4, 384], strides = [1, 1]} : vector<4x422xf32> to vector<4x384xf32>
    %6 = vector.extract_strided_slice %1 {offsets = [0, 19], sizes = [4, 384], strides = [1, 1]} : vector<4x422xf32> to vector<4x384xf32>
    %7 = vector.extract_strided_slice %1 {offsets = [0, 20], sizes = [4, 384], strides = [1, 1]} : vector<4x422xf32> to vector<4x384xf32>
    %8 = vector.extract_strided_slice %1 {offsets = [0, 36], sizes = [4, 384], strides = [1, 1]} : vector<4x422xf32> to vector<4x384xf32>
    %9 = vector.extract_strided_slice %1 {offsets = [0, 37], sizes = [4, 384], strides = [1, 1]} : vector<4x422xf32> to vector<4x384xf32>
    %10 = vector.extract_strided_slice %1 {offsets = [0, 38], sizes = [4, 384], strides = [1, 1]} : vector<4x422xf32> to vector<4x384xf32>
    %11 = tpu.concatenate %2, %3, %4, %5, %6, %7, %8, %9, %10 in 0 : vector<4x384xf32>, vector<4x384xf32>, vector<4x384xf32>, vector<4x384xf32>, vector<4x384xf32>, vector<4x384xf32>, vector<4x384xf32>, vector<4x384xf32>, vector<4x384xf32> -> vector<36x384xf32>
    %c0_2 = arith.constant 0 : index
    %c0_3 = arith.constant 0 : index
    %12 = vector.load %arg3[%c0_2, %c0_3] : memref<4x36xf32, #tpu.memory_space<vmem>>, vector<4x36xf32>
    %cst = arith.constant dense<0.000000e+00> : vector<4x384xf32>
    %13 = tpu.matmul %12, %11, %cst {dimension_numbers = #tpu.dot_dimension_numbers<[1], [0], [0], [1], [0, 0, 1, 1], [], []>} : vector<4x36xf32>, vector<36x384xf32>, vector<4x384xf32> -> vector<4x384xf32>
    %c0_4 = arith.constant 0 : index
    %c0_5 = arith.constant 0 : index
    %14 = vector.load %arg4[%c0_4, %c0_5] : memref<1x384xf32, #tpu.memory_space<vmem>>, vector<1x384xf32>
    %15 = vector.broadcast %14 : vector<1x384xf32> to vector<4x384xf32>
    %16 = arith.mulf %13, %15 : vector<4x384xf32>
    %cst_6 = arith.constant dense<0.000000e+00> : vector<4xf32>
    %17 = vector.multi_reduction <add>, %16, %cst_6 [1] : vector<4x384xf32> to vector<4xf32>
    %18 = vector.shape_cast %17 : vector<4xf32> to vector<4x1xf32>
    %cst_7 = arith.constant 3.906250e-03 : f32
    %19 = vector.broadcast %cst_7 : f32 to vector<4x1xf32>
    %20 = arith.mulf %18, %19 : vector<4x1xf32>
    %21 = vector.broadcast %20 : vector<4x1xf32> to vector<4x384xf32>
    %22 = arith.subf %13, %21 : vector<4x384xf32>
    %23 = vector.broadcast %14 : vector<1x384xf32> to vector<4x384xf32>
    %24 = arith.mulf %22, %23 : vector<4x384xf32>
    %25 = arith.mulf %24, %24 : vector<4x384xf32>
    %cst_8 = arith.constant dense<0.000000e+00> : vector<4xf32>
    %26 = vector.multi_reduction <add>, %25, %cst_8 [1] : vector<4x384xf32> to vector<4xf32>
    %27 = vector.shape_cast %26 : vector<4xf32> to vector<4x1xf32>
    %cst_9 = arith.constant 3.906250e-03 : f32
    %28 = vector.broadcast %cst_9 : f32 to vector<4x1xf32>
    %29 = arith.mulf %27, %28 : vector<4x1xf32>
    %cst_10 = arith.constant 9.99999974E-6 : f32
    %30 = vector.broadcast %cst_10 : f32 to vector<4x1xf32>
    %31 = arith.addf %29, %30 : vector<4x1xf32>
    %32 = math.rsqrt %31 : vector<4x1xf32>
    %33 = vector.broadcast %32 : vector<4x1xf32> to vector<4x384xf32>
    %34 = arith.mulf %22, %33 : vector<4x384xf32>
    %cst_11 = arith.constant 0.000000e+00 : f32
    %35 = vector.broadcast %cst_11 : f32 to vector<4x384xf32>
    %36 = arith.maximumf %34, %35 : vector<4x384xf32>
    %c0_12 = arith.constant 0 : index
    %c0_13 = arith.constant 0 : index
    %c0_14 = arith.constant 0 : index
    %37 = vector.load %arg5[%c0_12, %c0_13, %c0_14] : memref<1x4x384xf32, #tpu.memory_space<vmem>>, vector<1x4x384xf32>
    %38 = vector.shape_cast %37 : vector<1x4x384xf32> to vector<4x384xf32>
    %39 = vector.shape_cast %36 : vector<4x384xf32> to vector<1x4x384xf32>
    tpu.vector_store %arg5[%c0_12, %c0_13, %c0_14], %39 {strides = array<i32>} : memref<1x4x384xf32, #tpu.memory_space<vmem>>, vector<1x4x384xf32>,
    return
  }
  func.func @transform_0(%arg0: i32, %arg1: i32) -> (i32, i32, i32) {
    %c0_i32 = arith.constant 0 : i32
    %c0_i32_0 = arith.constant 0 : i32
    %c0_i32_1 = arith.constant 0 : i32
    return %arg0, %c0_i32, %c0_i32_0 : i32, i32, i32
  }
  func.func @transform_1(%arg0: i32, %arg1: i32) -> (i32, i32) {
    %c0_i32 = arith.constant 0 : i32
    %c0_i32_0 = arith.constant 0 : i32
    return %arg1, %c0_i32 : i32, i32
  }
  func.func @transform_2(%arg0: i32, %arg1: i32) -> (i32, i32) {
    %c0_i32 = arith.constant 0 : i32
    %c0_i32_0 = arith.constant 0 : i32
    %c0_i32_1 = arith.constant 0 : i32
    return %c0_i32, %c0_i32_0 : i32, i32
  }
  func.func @transform_3(%arg0: i32, %arg1: i32) -> (i32, i32, i32) {
    %c0_i32 = arith.constant 0 : i32
    %c0_i32_0 = arith.constant 0 : i32
    return %arg0, %arg1, %c0_i32 : i32, i32, i32
  }
}

module attributes {stable_mosaic.version = 11 : i64} {
  func.func @_conv_in_kernel(%arg0: i32, %arg1: i32, %arg2: memref<1x4x422xf32, #tpu.memory_space<vmem>>, %arg3: memref<4x36xf32, #tpu.memory_space<vmem>>, %arg4: memref<1x384xf32, #tpu.memory_space<vmem>>, %arg5: memref<1x4x384xf32, #tpu.memory_space<vmem>>, %arg6: memref<1x4x384xf32, #tpu.memory_space<vmem>>) attributes {dimension_semantics = [#tpu.dimension_semantics<parallel>, #tpu.dimension_semantics<parallel>], iteration_bounds = array<i64: 2, 1>, scalar_prefetch = 0 : i64, scratch_operands = 0 : i64, tpu.core_type = #tpu.core_type<tc>, window_params = [{transform_indices = @transform_0, window_bounds = array<i64: 1, 4, 422>}, {transform_indices = @transform_1, window_bounds = array<i64: 4, 36>}, {pipeline_mode = #tpu.pipeline_mode<synchronous>, transform_indices = @transform_2, window_bounds = array<i64: 1, 384>}, {transform_indices = @transform_3, window_bounds = array<i64: 1, 4, 384>}, {transform_indices = @transform_4, window_bounds = array<i64: 1, 4, 384>}]} {
    %c0 = arith.constant 0 : index
    %c0_0 = arith.constant 0 : index
    %c0_1 = arith.constant 0 : index
    %0 = vector.load %arg2[%c0, %c0_0, %c0_1] : memref<1x4x422xf32, #tpu.memory_space<vmem>>, vector<1x4x422xf32>
    %1 = vector.shape_cast %0 : vector<1x4x422xf32> to vector<4x422xf32>
    %2 = vector.extract_strided_slice %1 {offsets = [0, 0], sizes = [4, 384], strides = [1, 1]} : vector<4x422xf32> to vector<4x384xf32>
    %3 = vector.extract_strided_slice %1 {offsets = [0, 1], sizes = [4, 384], strides = [1, 1]} : vector<4x422xf32> to vector<4x384xf32>
    %4 = vector.extract_strided_slice %1 {offsets = [0, 2], sizes = [4, 384], strides = [1, 1]} : vector<4x422xf32> to vector<4x384xf32>
    %5 = vector.extract_strided_slice %1 {offsets = [0, 18], sizes = [4, 384], strides = [1, 1]} : vector<4x422xf32> to vector<4x384xf32>
    %6 = vector.extract_strided_slice %1 {offsets = [0, 19], sizes = [4, 384], strides = [1, 1]} : vector<4x422xf32> to vector<4x384xf32>
    %7 = vector.extract_strided_slice %1 {offsets = [0, 20], sizes = [4, 384], strides = [1, 1]} : vector<4x422xf32> to vector<4x384xf32>
    %8 = vector.extract_strided_slice %1 {offsets = [0, 36], sizes = [4, 384], strides = [1, 1]} : vector<4x422xf32> to vector<4x384xf32>
    %9 = vector.extract_strided_slice %1 {offsets = [0, 37], sizes = [4, 384], strides = [1, 1]} : vector<4x422xf32> to vector<4x384xf32>
    %10 = vector.extract_strided_slice %1 {offsets = [0, 38], sizes = [4, 384], strides = [1, 1]} : vector<4x422xf32> to vector<4x384xf32>
    %11 = tpu.concatenate %2, %3, %4, %5, %6, %7, %8, %9, %10 in 0 : vector<4x384xf32>, vector<4x384xf32>, vector<4x384xf32>, vector<4x384xf32>, vector<4x384xf32>, vector<4x384xf32>, vector<4x384xf32>, vector<4x384xf32>, vector<4x384xf32> -> vector<36x384xf32>
    %c0_2 = arith.constant 0 : index
    %c0_3 = arith.constant 0 : index
    %12 = vector.load %arg3[%c0_2, %c0_3] : memref<4x36xf32, #tpu.memory_space<vmem>>, vector<4x36xf32>
    %cst = arith.constant dense<0.000000e+00> : vector<4x384xf32>
    %13 = tpu.matmul %12, %11, %cst {dimension_numbers = #tpu.dot_dimension_numbers<[1], [0], [0], [1], [0, 0, 1, 1], [], []>} : vector<4x36xf32>, vector<36x384xf32>, vector<4x384xf32> -> vector<4x384xf32>
    %c0_4 = arith.constant 0 : index
    %c0_5 = arith.constant 0 : index
    %14 = vector.load %arg4[%c0_4, %c0_5] : memref<1x384xf32, #tpu.memory_space<vmem>>, vector<1x384xf32>
    %15 = vector.broadcast %14 : vector<1x384xf32> to vector<4x384xf32>
    %16 = arith.mulf %13, %15 : vector<4x384xf32>
    %cst_6 = arith.constant dense<0.000000e+00> : vector<4xf32>
    %17 = vector.multi_reduction <add>, %16, %cst_6 [1] : vector<4x384xf32> to vector<4xf32>
    %18 = vector.shape_cast %17 : vector<4xf32> to vector<4x1xf32>
    %cst_7 = arith.constant 3.906250e-03 : f32
    %19 = vector.broadcast %cst_7 : f32 to vector<4x1xf32>
    %20 = arith.mulf %18, %19 : vector<4x1xf32>
    %21 = vector.broadcast %20 : vector<4x1xf32> to vector<4x384xf32>
    %22 = arith.subf %13, %21 : vector<4x384xf32>
    %23 = vector.broadcast %14 : vector<1x384xf32> to vector<4x384xf32>
    %24 = arith.mulf %22, %23 : vector<4x384xf32>
    %25 = arith.mulf %24, %24 : vector<4x384xf32>
    %cst_8 = arith.constant dense<0.000000e+00> : vector<4xf32>
    %26 = vector.multi_reduction <add>, %25, %cst_8 [1] : vector<4x384xf32> to vector<4xf32>
    %27 = vector.shape_cast %26 : vector<4xf32> to vector<4x1xf32>
    %cst_9 = arith.constant 3.906250e-03 : f32
    %28 = vector.broadcast %cst_9 : f32 to vector<4x1xf32>
    %29 = arith.mulf %27, %28 : vector<4x1xf32>
    %cst_10 = arith.constant 9.99999974E-6 : f32
    %30 = vector.broadcast %cst_10 : f32 to vector<4x1xf32>
    %31 = arith.addf %29, %30 : vector<4x1xf32>
    %32 = math.rsqrt %31 : vector<4x1xf32>
    %33 = vector.broadcast %32 : vector<4x1xf32> to vector<4x384xf32>
    %34 = arith.mulf %22, %33 : vector<4x384xf32>
    %c0_11 = arith.constant 0 : index
    %c0_12 = arith.constant 0 : index
    %c0_13 = arith.constant 0 : index
    %35 = vector.load %arg5[%c0_11, %c0_12, %c0_13] : memref<1x4x384xf32, #tpu.memory_space<vmem>>, vector<1x4x384xf32>
    %36 = vector.shape_cast %35 : vector<1x4x384xf32> to vector<4x384xf32>
    %37 = arith.addf %34, %36 : vector<4x384xf32>
    %c0_14 = arith.constant 0 : index
    %c0_15 = arith.constant 0 : index
    %c0_16 = arith.constant 0 : index
    %38 = vector.load %arg6[%c0_14, %c0_15, %c0_16] : memref<1x4x384xf32, #tpu.memory_space<vmem>>, vector<1x4x384xf32>
    %39 = vector.shape_cast %38 : vector<1x4x384xf32> to vector<4x384xf32>
    %40 = vector.shape_cast %37 : vector<4x384xf32> to vector<1x4x384xf32>
    tpu.vector_store %arg6[%c0_14, %c0_15, %c0_16], %40 {strides = array<i32>} : memref<1x4x384xf32, #tpu.memory_space<vmem>>, vector<1x4x384xf32>,
    return
  }
  func.func @transform_0(%arg0: i32, %arg1: i32) -> (i32, i32, i32) {
    %c0_i32 = arith.constant 0 : i32
    %c0_i32_0 = arith.constant 0 : i32
    %c0_i32_1 = arith.constant 0 : i32
    return %arg0, %c0_i32, %c0_i32_0 : i32, i32, i32
  }
  func.func @transform_1(%arg0: i32, %arg1: i32) -> (i32, i32) {
    %c0_i32 = arith.constant 0 : i32
    %c0_i32_0 = arith.constant 0 : i32
    return %arg1, %c0_i32 : i32, i32
  }
  func.func @transform_2(%arg0: i32, %arg1: i32) -> (i32, i32) {
    %c0_i32 = arith.constant 0 : i32
    %c0_i32_0 = arith.constant 0 : i32
    %c0_i32_1 = arith.constant 0 : i32
    return %c0_i32, %c0_i32_0 : i32, i32
  }
  func.func @transform_3(%arg0: i32, %arg1: i32) -> (i32, i32, i32) {
    %c0_i32 = arith.constant 0 : i32
    %c0_i32_0 = arith.constant 0 : i32
    return %arg0, %arg1, %c0_i32 : i32, i32, i32
  }
  func.func @transform_4(%arg0: i32, %arg1: i32) -> (i32, i32, i32) {
    %c0_i32 = arith.constant 0 : i32
    %c0_i32_0 = arith.constant 0 : i32
    return %arg0, %arg1, %c0_i32 : i32, i32, i32
  }
}

</mosaic_0001>

<llo_original>
// kernel: resnet_forward.3
$region0: #{resnet_forward.3}
  #allocation0 [shape = 'u32[]', space=smem, size = 0x4, offset = 0x4, fixed_abs, tag = 'smem constant byte address 0x4 - core index']
  #allocation1 [shape = 'u32[144,128]{1,0:T(1,128)}', space=vmem, size = 0x12000, scoped, tag = 'internal scratch']
  %s0 = inlined_call_operand.vmem [shape: f32[2,4,422], index: 0, kind: input, shape index: {}]
  %s1 = inlined_call_operand.vmem [shape: f32[4,36], index: 1, kind: input, shape index: {}]
  %s2 = inlined_call_operand.vmem [shape: f32[1,384], index: 2, kind: input, shape index: {}]
  %s3 = inlined_call_operand.vmem [shape: f32[2,4,384], index: 3, kind: input, shape index: {}]
  %s4 = inlined_call_operand.vmem [shape: f32[2,4,384], index: 4, kind: output, shape index: {}]
  %s5 = sld [smem:[#allocation0]]
  $region49: #{resnet_forward.3} parent=0
    _
  %s7 = ssub.s32 1, %s5
  %s8 = scalar_select 0, %s7, %s5
  loop: start=0, step=1, limit=4
  $region2: #{resnet_forward.3} parent=0 // loop_pre_header
    _
  $region3: #{resnet_forward.3} parent=0 // loop_header
    %s10 = sphi 0, %s14
    %p11 = scmp.ge.s32.totalorder %s10, 4
    %s17 = sphi 0, %s29
    %s18 = sphi 0, %s25
    %s19 = sphi 0, %s17
    %s20 = sphi 0, %s18
    %s21 = sphi 0, %s19
    %s22 = sphi 0, %s20
    %s32 = sphi 0, %s34
    %s35 = sphi 0, %s32
    %s36 = sphi 0, %s35
    %s52 = sphi 0, %s36
    %s58 = sphi 0, %s60
    %s61 = sphi 0, %s58
    %s62 = sphi 0, %s61
    %s78 = sphi 0, %s62
    %s82 = sphi 0, %s82
    %s84 = sphi 0, %s82
    %s85 = sphi 0, %s84
    %s99 = sphi 0, %s85
    %s107 = sphi 0, %s109
    %s110 = sphi 0, %s107
    %s111 = sphi 0, %s110
    %s127 = sphi 0, %s111
    %s135 = sphi 0, %s137
    %s138 = sphi 0, %s135
    %s139 = sphi 0, %s138
    %s155 = sphi 0, %s139
  $region4: #{resnet_forward.3} parent=0 // loop_header_branch
    %13 = sbr.rel (%p11) target = $region8
  $region5: #{resnet_forward.3} parent=0 // loop_body
    %s15 = ssub.s32 %s10, 1
    %s16 = ssub.s32 %s10, 2
    %s23 = sadd.s32 1, %s18
    %p24 = scmp.ge.s32.totalorder %s23, 1
    %s25 = scalar_select %p24, 0, %s23
    %s26 = sadd.s32 1, %s17
    %s27 = scalar_select %p24, %s26, %s17
    %p28 = scmp.ge.s32.totalorder %s27, 2
    %s29 = scalar_select %p28, 0, %s27
    %s30 = ssub.s32 %s17, %s29
    %p31 = scmp.eq.s32.totalorder %s30, 0
    %s33 = sadd.s32 %s32, 1
    %s34 = scalar_select %p31, %s32, %s33
    %p37 = pneg %p31
    %p38 = scmp.eq.s32.totalorder %s10, 1
    %p39 = por %p37, %p38
    %p40 = scmp.ne.s32.totalorder %s32, %s35
    %p41 = scmp.eq.s32.totalorder %s10, 0
    %p42 = por %p40, %p41
    %p43 = scmp.ne.s32.totalorder %s32, %s35
    %p44 = scmp.eq.s32.totalorder %s15, 1
    %p45 = por %p43, %p44
    %p46 = scmp.ne.s32.totalorder %s35, %s36
    %p47 = scmp.eq.s32.totalorder %s15, 0
    %p48 = por %p46, %p47
    %p49 = scmp.ne.s32.totalorder %s35, %s36
    %p50 = scmp.eq.s32.totalorder %s16, 1
    %p51 = por %p49, %p50
    %p53 = scmp.ne.s32.totalorder %s36, %s52
    %p54 = scmp.eq.s32.totalorder %s16, 0
    %p55 = por %p53, %p54
    %s56 = ssub.s32 %s18, %s25
    %p57 = scmp.eq.s32.totalorder %s56, 0
    %s59 = sadd.s32 %s58, 1
    %s60 = scalar_select %p57, %s58, %s59
    %p63 = pneg %p57
    %p64 = scmp.eq.s32.totalorder %s10, 1
    %p65 = por %p63, %p64
    %p66 = scmp.ne.s32.totalorder %s58, %s61
    %p67 = scmp.eq.s32.totalorder %s10, 0
    %p68 = por %p66, %p67
    %p69 = scmp.ne.s32.totalorder %s58, %s61
    %p70 = scmp.eq.s32.totalorder %s15, 1
    %p71 = por %p69, %p70
    %p72 = scmp.ne.s32.totalorder %s61, %s62
    %p73 = scmp.eq.s32.totalorder %s15, 0
    %p74 = por %p72, %p73
    %p75 = scmp.ne.s32.totalorder %s61, %s62
    %p76 = scmp.eq.s32.totalorder %s16, 1
    %p77 = por %p75, %p76
    %p79 = scmp.ne.s32.totalorder %s62, %s78
    %p80 = scmp.eq.s32.totalorder %s16, 0
    %p81 = por %p79, %p80
    %s83 = sadd.s32 %s82, 1
    %p86 = scmp.eq.s32.totalorder %s10, 1
    %p87 = scmp.ne.s32.totalorder %s82, %s84
    %p88 = scmp.eq.s32.totalorder %s10, 0
    %p89 = por %p87, %p88
    %p90 = scmp.ne.s32.totalorder %s82, %s84
    %p91 = scmp.eq.s32.totalorder %s15, 1
    %p92 = por %p90, %p91
    %p93 = scmp.ne.s32.totalorder %s84, %s85
    %p94 = scmp.eq.s32.totalorder %s15, 0
    %p95 = por %p93, %p94
    %p96 = scmp.ne.s32.totalorder %s84, %s85
    %p97 = scmp.eq.s32.totalorder %s16, 1
    %p98 = por %p96, %p97
    %p100 = scmp.ne.s32.totalorder %s85, %s99
    %p101 = scmp.eq.s32.totalorder %s16, 0
    %p102 = por %p100, %p101
    %s103 = ssub.s32 %s17, %s29
    %s104 = ssub.s32 %s18, %s25
    %s105 = sor.u32 %s103, %s104
    %p106 = scmp.eq.s32.totalorder %s105, 0
    %s108 = sadd.s32 %s107, 1
    %s109 = scalar_select %p106, %s107, %s108
    %p112 = pneg %p106
    %p113 = scmp.eq.s32.totalorder %s10, 1
    %p114 = por %p112, %p113
    %p115 = scmp.ne.s32.totalorder %s107, %s110
    %p116 = scmp.eq.s32.totalorder %s10, 0
    %p117 = por %p115, %p116
    %p118 = scmp.ne.s32.totalorder %s107, %s110
    %p119 = scmp.eq.s32.totalorder %s15, 1
    %p120 = por %p118, %p119
    %p121 = scmp.ne.s32.totalorder %s110, %s111
    %p122 = scmp.eq.s32.totalorder %s15, 0
    %p123 = por %p121, %p122
    %p124 = scmp.ne.s32.totalorder %s110, %s111
    %p125 = scmp.eq.s32.totalorder %s16, 1
    %p126 = por %p124, %p125
    %p128 = scmp.ne.s32.totalorder %s111, %s127
    %p129 = scmp.eq.s32.totalorder %s16, 0
    %p130 = por %p128, %p129
    %s131 = ssub.s32 %s17, %s29
    %s132 = ssub.s32 %s18, %s25
    %s133 = sor.u32 %s131, %s132
    %p134 = scmp.eq.s32.totalorder %s133, 0
    %s136 = sadd.s32 %s135, 1
    %s137 = scalar_select %p134, %s135, %s136
    %p140 = pneg %p134
    %p141 = scmp.eq.s32.totalorder %s10, 1
    %p142 = por %p140, %p141
    %p143 = scmp.ne.s32.totalorder %s135, %s138
    %p144 = scmp.eq.s32.totalorder %s10, 0
    %p145 = por %p143, %p144
    %p146 = scmp.ne.s32.totalorder %s135, %s138
    %p147 = scmp.eq.s32.totalorder %s15, 1
    %p148 = por %p146, %p147
    %p149 = scmp.ne.s32.totalorder %s138, %s139
    %p150 = scmp.eq.s32.totalorder %s15, 0
    %p151 = por %p149, %p150
    %p152 = scmp.ne.s32.totalorder %s138, %s139
    %p153 = scmp.eq.s32.totalorder %s16, 1
    %p154 = por %p152, %p153
    %p156 = scmp.ne.s32.totalorder %s139, %s155
    %p157 = scmp.eq.s32.totalorder %s16, 0
    %p158 = por %p156, %p157
    %p159 = scmp.le.s32.totalorder 1, %s10
    %p160 = scmp.lt.s32.totalorder %s10, 3
    %p161 = pnand %p159, %p160
    %p162 = pneg %p161
    // Predicated region
    $region9: #{resnet_forward.3} parent=5 // pred_check
      _
    $region10: #{resnet_forward.3} parent=5 // pred_check_branch
      %164 = sbr.rel (%p161) target = $region12
    $region11: #{resnet_forward.3} parent=5 // pred_region
      %s165 = ssub.s32 %s10, 1
      // Predicated region
      $region13: #{resnet_forward.3} parent=11 // pred_check
        %p166 = pneg %p74
      $region14: #{resnet_forward.3} parent=11 // pred_check_branch
        %168 = sbr.rel (%p166) target = $region16
      $region15: #{resnet_forward.3} parent=11 // pred_region
        %p169 = scmp.lt.s32.totalorder %s20, 0
        %s170 = scalar_select %p169, %s20, 0
        %s171 = smul.addr %s170, 4
        %s172 = scalar_lea.vmem %s1, %s171
      $region16: #{resnet_forward.3} parent=11 // pred_fallthru
        _
      // Predicated region
      $region17: #{resnet_forward.3} parent=11 // pred_check
        %p173 = pneg %p95
      $region18: #{resnet_forward.3} parent=11 // pred_check_branch
        %175 = sbr.rel (%p173) target = $region20
      $region19: #{resnet_forward.3} parent=11 // pred_region
        _
      $region20: #{resnet_forward.3} parent=11 // pred_fallthru
        _
    $region12: #{resnet_forward.3} parent=5 // pred_fallthru
      _
    %p176 = scmp.lt.s32.totalorder %s10, 2
    // Predicated region
    $region21: #{resnet_forward.3} parent=5 // pred_check
      %p177 = pneg %p176
    $region22: #{resnet_forward.3} parent=5 // pred_check_branch
      %179 = sbr.rel (%p177) target = $region24
    $region23: #{resnet_forward.3} parent=5 // pred_region
      // Predicated region
      $region25: #{resnet_forward.3} parent=23 // pred_check
        %p180 = pneg %p42
      $region26: #{resnet_forward.3} parent=23 // pred_check_branch
        %182 = sbr.rel (%p180) target = $region28
      $region27: #{resnet_forward.3} parent=23 // pred_region
        %p183 = scmp.lt.s32.totalorder %s17, 1
        %s184 = scalar_select %p183, %s17, 1
        %s185 = smul.addr %s184, 4
        %s186 = smul.addr %s185, 4
        %s187 = scalar_lea.vmem %s0, %s186
      $region28: #{resnet_forward.3} parent=23 // pred_fallthru
        _
      // Predicated region
      $region29: #{resnet_forward.3} parent=23 // pred_check
        %p188 = pneg %p117
      $region30: #{resnet_forward.3} parent=23 // pred_check_branch
        %190 = sbr.rel (%p188) target = $region32
      $region31: #{resnet_forward.3} parent=23 // pred_region
        %p191 = scmp.lt.s32.totalorder %s17, 1
        %s192 = scalar_select %p191, %s17, 1
        %p193 = scmp.lt.s32.totalorder %s18, 0
        %s194 = scalar_select %p193, %s18, 0
        %s195 = smul.addr %s194, 3
        %s196 = smul.addr %s192, 3
        %s197 = sadd.s32 %s195, %s196
        %s198 = smul.addr %s197, 4
        %s199 = scalar_lea.vmem %s3, %s198
      $region32: #{resnet_forward.3} parent=23 // pred_fallthru
        _
    $region24: #{resnet_forward.3} parent=5 // pred_fallthru
      _
    %p200 = scmp.le.s32.totalorder 1, %s10
    %p201 = scmp.lt.s32.totalorder %s10, 3
    %p202 = pnand %p200, %p201
    %p203 = pneg %p202
    // Predicated region
    $region33: #{resnet_forward.3} parent=5 // pred_check
      _
    $region34: #{resnet_forward.3} parent=5 // pred_check_branch
      %205 = sbr.rel (%p202) target = $region36
    $region35: #{resnet_forward.3} parent=5 // pred_region
      %s206 = ssub.s32 %s10, 1
      %p207 = scmp.lt.s32.totalorder %s19, 1
      %s208 = scalar_select %p207, %s19, 1
      %s209 = smul.addr %s208, 4
      %s210 = smul.addr %s209, 4
      %s211 = scalar_lea.vmem %s0, %s210
      %p212 = pneg %p48
      %p213 = pneg %p45
      %p214 = scmp.lt.s32.totalorder %s20, 0
      %s215 = scalar_select %p214, %s20, 0
      %s216 = smul.addr %s215, 4
      %s217 = scalar_lea.vmem %s1, %s216
      %p218 = pneg %p74
      %p219 = pneg %p71
      %p220 = pneg %p95
      %p221 = pneg %p92
      %p222 = scmp.lt.s32.totalorder %s19, 1
      %s223 = scalar_select %p222, %s19, 1
      %p224 = scmp.lt.s32.totalorder %s20, 0
      %s225 = scalar_select %p224, %s20, 0
      %s226 = smul.addr %s225, 3
      %s227 = smul.addr %s223, 3
      %s228 = sadd.s32 %s226, %s227
      %s229 = smul.addr %s228, 4
      %s230 = scalar_lea.vmem %s3, %s229
      %p231 = pneg %p123
      %p232 = pneg %p120
      %p233 = pneg %p151
      %p234 = pneg %p148
      %p235 = scmp.lt.s32.totalorder %s19, 1
      %s236 = scalar_select %p235, %s19, 1
      %p237 = scmp.lt.s32.totalorder %s20, 0
      %s238 = scalar_select %p237, %s20, 0
      %s239 = smul.addr %s238, 3
      %s240 = smul.addr %s236, 3
      %s241 = sadd.s32 %s239, %s240
      %s242 = smul.addr %s241, 4
      %s243 = scalar_lea.vmem %s4, %s242
      %p244 = scmp.lt.s32.totalorder %s19, 1
      %s245 = scalar_select %p244, %s19, 1
      %s246 = smul.addr %s245, 4
      %s247 = smul.addr %s246, 4
      %s248 = scalar_lea.vmem %s0, %s247
      %p249 = scmp.lt.s32.totalorder %s20, 0
      %s250 = scalar_select %p249, %s20, 0
      %s251 = smul.addr %s250, 4
      %s252 = scalar_lea.vmem %s1, %s251
      %p253 = scmp.lt.s32.totalorder %s19, 1
      %s254 = scalar_select %p253, %s19, 1
      %p255 = scmp.lt.s32.totalorder %s20, 0
      %s256 = scalar_select %p255, %s20, 0
      %s257 = smul.addr %s256, 3
      %s258 = smul.addr %s254, 3
      %s259 = sadd.s32 %s257, %s258
      %s260 = smul.addr %s259, 4
      %s261 = scalar_lea.vmem %s3, %s260
      %p262 = scmp.lt.s32.totalorder %s19, 1
      %s263 = scalar_select %p262, %s19, 1
      %p264 = scmp.lt.s32.totalorder %s20, 0
      %s265 = scalar_select %p264, %s20, 0
      %s266 = smul.addr %s265, 3
      %s267 = smul.addr %s263, 3
      %s268 = sadd.s32 %s266, %s267
      %s269 = smul.addr %s268, 4
      %s270 = scalar_lea.vmem %s4, %s269
      %v271 = vld [vmem:[%s248] sm:$0xff]
      %v272 = vld [vmem:[%s248 + $0x8] sm:$0xff]
      %v275 = vcombine.high %v271, %v271
      %v277 = vcombine.low %v271, %v271
      %v278 = vcombine.low %v272, %v272
      %279 = vrot.lane.b32.xlu0 %v277, 127
      %v280 = vpop.permute.xlu0 %279
      %281 = vrot.lane.b32.xlu0 %v271, 127
      %v282 = vpop.permute.xlu0 %281
      %283 = vrot.lane.b32.xlu0 %v278, 127
      %v284 = vpop.permute.xlu0 %283
      %285 = vrot.lane.b32.xlu0 %v272, 127
      %v286 = vpop.permute.xlu0 %285
      %vm287 = vcmask 1039360
      %v288 = vsel %vm287, %v280, %v282
      %v289 = vsel %vm287, %v282, %v284
      %v290 = vsel %vm287, %v284, %v286
      %v294 = vcombine.high %v272, %v272
      %295 = vrot.lane.b32.xlu0 %v271, 126
      %v296 = vpop.permute.xlu0 %295
      %297 = vrot.lane.b32.xlu0 %v275, 126
      %v298 = vpop.permute.xlu0 %297
      %299 = vrot.lane.b32.xlu0 %v272, 126
      %v300 = vpop.permute.xlu0 %299
      %301 = vrot.lane.b32.xlu0 %v294, 126
      %v302 = vpop.permute.xlu0 %301
      %vm303 = vcmask 1031168
      %v304 = vsel %vm303, %v296, %v298
      %v305 = vsel %vm303, %v298, %v300
      %v306 = vsel %vm303, %v300, %v302
      %310 = vrot.lane.b32.xlu0 %v277, 110
      %v311 = vpop.permute.xlu0 %310
      %312 = vrot.lane.b32.xlu0 %v271, 110
      %v313 = vpop.permute.xlu0 %312
      %314 = vrot.lane.b32.xlu0 %v278, 110
      %v315 = vpop.permute.xlu0 %314
      %316 = vrot.lane.b32.xlu0 %v272, 110
      %v317 = vpop.permute.xlu0 %316
      %vm318 = vcmask 900096
      %v319 = vsel %vm318, %v311, %v313
      %v320 = vsel %vm318, %v313, %v315
      %v321 = vsel %vm318, %v315, %v317
      %325 = vrot.lane.b32.xlu0 %v271, 109
      %v326 = vpop.permute.xlu0 %325
      %327 = vrot.lane.b32.xlu0 %v275, 109
      %v328 = vpop.permute.xlu0 %327
      %329 = vrot.lane.b32.xlu0 %v272, 109
      %v330 = vpop.permute.xlu0 %329
      %331 = vrot.lane.b32.xlu0 %v294, 109
      %v332 = vpop.permute.xlu0 %331
      %vm333 = vcmask 891904
      %v334 = vsel %vm333, %v326, %v328
      %v335 = vsel %vm333, %v328, %v330
      %v336 = vsel %vm333, %v330, %v332
      %340 = vrot.lane.b32.xlu0 %v277, 108
      %v341 = vpop.permute.xlu0 %340
      %342 = vrot.lane.b32.xlu0 %v271, 108
      %v343 = vpop.permute.xlu0 %342
      %344 = vrot.lane.b32.xlu0 %v278, 108
      %v345 = vpop.permute.xlu0 %344
      %346 = vrot.lane.b32.xlu0 %v272, 108
      %v347 = vpop.permute.xlu0 %346
      %vm348 = vcmask 883712
      %v349 = vsel %vm348, %v341, %v343
      %v350 = vsel %vm348, %v343, %v345
      %v351 = vsel %vm348, %v345, %v347
      %355 = vrot.lane.b32.xlu0 %v271, 92
      %v356 = vpop.permute.xlu0 %355
      %357 = vrot.lane.b32.xlu0 %v275, 92
      %v358 = vpop.permute.xlu0 %357
      %359 = vrot.lane.b32.xlu0 %v272, 92
      %v360 = vpop.permute.xlu0 %359
      %361 = vrot.lane.b32.xlu0 %v294, 92
      %v362 = vpop.permute.xlu0 %361
      %vm363 = vcmask 752640
      %v364 = vsel %vm363, %v356, %v358
      %v365 = vsel %vm363, %v358, %v360
      %v366 = vsel %vm363, %v360, %v362
      %370 = vrot.lane.b32.xlu0 %v277, 91
      %v371 = vpop.permute.xlu0 %370
      %372 = vrot.lane.b32.xlu0 %v271, 91
      %v373 = vpop.permute.xlu0 %372
      %374 = vrot.lane.b32.xlu0 %v278, 91
      %v375 = vpop.permute.xlu0 %374
      %376 = vrot.lane.b32.xlu0 %v272, 91
      %v377 = vpop.permute.xlu0 %376
      %vm378 = vcmask 744448
      %v379 = vsel %vm378, %v371, %v373
      %v380 = vsel %vm378, %v373, %v375
      %v381 = vsel %vm378, %v375, %v377
      %385 = vrot.lane.b32.xlu0 %v271, 90
      %v386 = vpop.permute.xlu0 %385
      %387 = vrot.lane.b32.xlu0 %v275, 90
      %v388 = vpop.permute.xlu0 %387
      %389 = vrot.lane.b32.xlu0 %v272, 90
      %v390 = vpop.permute.xlu0 %389
      %391 = vrot.lane.b32.xlu0 %v294, 90
      %v392 = vpop.permute.xlu0 %391
      %vm393 = vcmask 736256
      %v394 = vsel %vm393, %v386, %v388
      %v395 = vsel %vm393, %v388, %v390
      %v396 = vsel %vm393, %v390, %v392
      %vm397 = vcmask 1043456
      %v398 = vsel %vm397, %v271, %v288
      %v399 = vsel %vm397, %v275, %v289
      %v400 = vsel %vm397, %v272, %v290
      %v401 = vsel %vm397, %v304, %v319
      %v402 = vsel %vm397, %v305, %v320
      %v403 = vsel %vm397, %v306, %v321
      %v404 = vsel %vm397, %v334, %v349
      %v405 = vsel %vm397, %v335, %v350
      %v406 = vsel %vm397, %v336, %v351
      %v407 = vsel %vm397, %v364, %v379
      %v408 = vsel %vm397, %v365, %v380
      %v409 = vsel %vm397, %v366, %v381
      %v410 = vld [vmem:[%s252] sm:$0xf]
      %vm411 = vcmask 293888
      %v413 = vsel %vm411, %v410, 0
      %v415 = vsel %vm397, %v394, 0
      %v417 = vsel %vm397, %v395, 0
      %v419 = vsel %vm397, %v396, 0
      %421 = vmatprep.subr.mxu0 %v399
      %422 = vmatpush1.msra.mxu0 %v398
      %423 = vmatprep.subr.mxu0 %v402
      %424 = vmatpush1.msra.mxu0 %v401
      %425 = vmatprep.subr.mxu0 %v405
      %426 = vmatpush1.msra.mxu0 %v404
      %427 = vmatprep.subr.mxu0 %v408
      %428 = vmatpush1.msra.mxu0 %v407
      %429 = vmatprep.subr.mxu0 %v417
      %430 = vmatpush1.msra.mxu0 %v415
      %431 = vmatprep.subr.mxu0 0.0
      %432 = vmatpush1.msra.mxu0 0.0
      %433 = vmatprep.subr.mxu0 0.0
      %434 = vmatpush1.msra.mxu0 0.0
      %435 = vmatprep.subr.mxu0 0.0
      %436 = vmatpush1.msra.mxu0 0.0
      %437 = vmatprep.subr.mxu0 0.0
      %438 = vmatpush1.msra.mxu0 0.0
      %439 = vmatprep.subr.mxu0 0.0
      %440 = vmatpush1.msra.mxu0 0.0
      %441 = vmatprep.subr.mxu0 0.0
      %442 = vmatpush1.msra.mxu0 0.0
      %443 = vmatprep.subr.mxu0 0.0
      %444 = vmatpush1.msra.mxu0 0.0
      %445 = vmatprep.subr.mxu0 0.0
      %446 = vmatpush1.msra.mxu0 0.0
      %447 = vmatprep.subr.mxu0 0.0
      %448 = vmatpush1.msra.mxu0 0.0
      %449 = vmatprep.subr.mxu0 0.0
      %450 = vmatpush1.msra.mxu0 0.0
      %451 = vmatprep.subr.mxu0 0.0
      %452 = vmatpush1.msra.mxu0 0.0
      %453 = vmatprep.subr.mxu0 0.0
      %454 = vmatpush1.msra.mxu0 0.0
      %455 = vmatprep.subr.mxu0 0.0
      %456 = vmatpush1.msra.mxu0 0.0
      %457 = vmatprep.subr.mxu0 0.0
      %458 = vmatpush1.msra.mxu0 0.0
      %459 = vmatprep.subr.mxu0 0.0
      %460 = vmatpush1.msra.mxu0 0.0
      %461 = vmatprep.subr.mxu0 0.0
      %462 = vmatpush1.msra.mxu0 0.0
      %463 = vmatprep.subr.mxu0 0.0
      %464 = vmatpush1.msra.mxu0 0.0
      %465 = vmatprep.subr.mxu0 0.0
      %466 = vmatpush1.msra.mxu0 0.0
      %467 = vmatprep.subr.mxu0 0.0
      %468 = vmatpush1.msra.mxu0 0.0
      %469 = vmatprep.subr.mxu0 0.0
      %470 = vmatpush1.msra.mxu0 0.0
      %471 = vmatprep.subr.mxu0 0.0
      %472 = vmatpush1.msra.mxu0 0.0
      %473 = vmatprep.subr.mxu0 0.0
      %474 = vmatpush1.msra.mxu0 0.0
      %475 = vmatprep.subr.mxu0 0.0
      %476 = vmatpush1.msra.mxu0 0.0
      %477 = vmatprep.subr.mxu0 0.0
      %478 = vmatpush1.msra.mxu0 0.0
      %479 = vmatprep.subr.mxu0 0.0
      %480 = vmatpush1.msra.mxu0 0.0
      %481 = vmatprep.subr.mxu0 0.0
      %482 = vmatpush1.msra.mxu0 0.0
      %483 = vmatprep.subr.mxu0 0.0
      %484 = vmatpush1.msra.mxu0 0.0
      %485 = vmatprep.mubr.f32.mxu0 0.0
      %486 = vmatmul.mubr.f32.gmra.mrb[0].mxu0 %v413
      %v487 = vpop.f32.mrb[0].mxu0
      %v488 = vadd.f32 0.0, %v487
      %v489 = vpop.f32.mrb[0].mxu0
      %v490 = vadd.f32 0.0, %v489
      %491 = vdwg.mxu0
      %492 = vmatprep.subr.mxu0 0.0
      %493 = vmatpush1.msra.mxu0 %v400
      %494 = vmatprep.subr.mxu0 0.0
      %495 = vmatpush1.msra.mxu0 %v403
      %496 = vmatprep.subr.mxu0 0.0
      %497 = vmatpush1.msra.mxu0 %v406
      %498 = vmatprep.subr.mxu0 0.0
      %499 = vmatpush1.msra.mxu0 %v409
      %500 = vmatprep.subr.mxu0 0.0
      %501 = vmatpush1.msra.mxu0 %v419
      %502 = vmatprep.subr.mxu0 0.0
      %503 = vmatpush1.msra.mxu0 0.0
      %504 = vmatprep.subr.mxu0 0.0
      %505 = vmatpush1.msra.mxu0 0.0
      %506 = vmatprep.subr.mxu0 0.0
      %507 = vmatpush1.msra.mxu0 0.0
      %508 = vmatprep.subr.mxu0 0.0
      %509 = vmatpush1.msra.mxu0 0.0
      %510 = vmatprep.subr.mxu0 0.0
      %511 = vmatpush1.msra.mxu0 0.0
      %512 = vmatprep.subr.mxu0 0.0
      %513 = vmatpush1.msra.mxu0 0.0
      %514 = vmatprep.subr.mxu0 0.0
      %515 = vmatpush1.msra.mxu0 0.0
      %516 = vmatprep.subr.mxu0 0.0
      %517 = vmatpush1.msra.mxu0 0.0
      %518 = vmatprep.subr.mxu0 0.0
      %519 = vmatpush1.msra.mxu0 0.0
      %520 = vmatprep.subr.mxu0 0.0
      %521 = vmatpush1.msra.mxu0 0.0
      %522 = vmatprep.subr.mxu0 0.0
      %523 = vmatpush1.msra.mxu0 0.0
      %524 = vmatprep.subr.mxu0 0.0
      %525 = vmatpush1.msra.mxu0 0.0
      %526 = vmatprep.subr.mxu0 0.0
      %527 = vmatpush1.msra.mxu0 0.0
      %528 = vmatprep.subr.mxu0 0.0
      %529 = vmatpush1.msra.mxu0 0.0
      %530 = vmatprep.subr.mxu0 0.0
      %531 = vmatpush1.msra.mxu0 0.0
      %532 = vmatprep.subr.mxu0 0.0
      %533 = vmatpush1.msra.mxu0 0.0
      %534 = vmatprep.subr.mxu0 0.0
      %535 = vmatpush1.msra.mxu0 0.0
      %536 = vmatprep.subr.mxu0 0.0
      %537 = vmatpush1.msra.mxu0 0.0
      %538 = vmatprep.subr.mxu0 0.0
      %539 = vmatpush1.msra.mxu0 0.0
      %540 = vmatprep.subr.mxu0 0.0
      %541 = vmatpush1.msra.mxu0 0.0
      %542 = vmatprep.subr.mxu0 0.0
      %543 = vmatpush1.msra.mxu0 0.0
      %544 = vmatprep.subr.mxu0 0.0
      %545 = vmatpush1.msra.mxu0 0.0
      %546 = vmatprep.subr.mxu0 0.0
      %547 = vmatpush1.msra.mxu0 0.0
      %548 = vmatprep.subr.mxu0 0.0
      %549 = vmatpush1.msra.mxu0 0.0
      %550 = vmatprep.subr.mxu0 0.0
      %551 = vmatpush1.msra.mxu0 0.0
      %552 = vmatprep.subr.mxu0 0.0
      %553 = vmatpush1.msra.mxu0 0.0
      %554 = vmatprep.subr.mxu0 0.0
      %555 = vmatpush1.msra.mxu0 0.0
      %556 = vmatprep.mubr.f32.mxu0 0.0
      %557 = vmatmul.mubr.f32.gmra.mrb[0].mxu0 %v413
      %v558 = vpop.f32.mrb[0].mxu0
      %v559 = vadd.f32 0.0, %v558
      %v560 = vpop.f32.mrb[0].mxu0
      %561 = vdwg.mxu0
      %v562 = vld [vmem:[%s2] sm:$0x7]
      %v564 = vlaneseq
      %v565 = vshrl.u32 %v564, 7
      %v566 = vsub.s32 0, %v565
      %v567 = vrot.slane %v562, %v566
      %v568 = vlaneseq
      %v569 = vshrl.u32 %v568, 7
      %v570 = vsub.s32 1, %v569
      %v571 = vrot.slane %v562, %v570
      %v572 = vlaneseq
      %v573 = vshrl.u32 %v572, 7
      %v574 = vsub.s32 2, %v573
      %v575 = vrot.slane %v562, %v574
      %v579 = vmul.f32 %v488, %v567
      %v580 = vmul.f32 %v490, %v571
      %v581 = vmul.f32 %v559, %v575
      %v582 = vsel %vm397, %v579, 0.0
      %v583 = vsel %vm397, %v580, 0.0
      %v584 = vadd.f32 %v582, %v583
      %v585 = vsel %vm397, %v581, 0.0
      %v586 = vadd.f32 %v584, %v585
      %587 = vadd.xlane.f32.xlu0 %v586
      %v588 = vpop.xlane.xlu0 %587
      %v589 = vmul.f32 %v588, 0.00390625
      %v590 = vsub.f32 %v488, %v589
      %v591 = vsub.f32 %v490, %v589
      %v592 = vsub.f32 %v559, %v589
      %v593 = vmul.f32 %v590, %v567
      %v594 = vmul.f32 %v591, %v571
      %v595 = vmul.f32 %v592, %v575
      %v596 = vmul.f32 %v593, %v593
      %v597 = vmul.f32 %v594, %v594
      %v598 = vmul.f32 %v595, %v595
      %v599 = vsel %vm397, %v596, 0.0
      %v600 = vsel %vm397, %v597, 0.0
      %v601 = vadd.f32 %v599, %v600
      %v602 = vsel %vm397, %v598, 0.0
      %v603 = vadd.f32 %v601, %v602
      %604 = vadd.xlane.f32.xlu0 %v603
      %v605 = vpop.xlane.xlu0 %604
      %v606 = vmul.f32 %v605, 0.00390625
      %v607 = vadd.f32 %v606, 1e-05
      %v608 = vrsqrt.pop %v607
      %v609 = vmul.f32 %v590, %v608
      %v610 = vmul.f32 %v591, %v608
      %v611 = vmul.f32 %v592, %v608
      %v612 = vld [vmem:[%s261] sm:$0xff]
      %v613 = vld [vmem:[%s261 + $0x8] sm:$0xf]
      %v615 = vcombine.high %v612, %v612
      %v617 = vadd.f32 %v609, %v612
      %v618 = vadd.f32 %v610, %v615
      %v619 = vadd.f32 %v611, %v613
      %v622 = vcombine.low %v617, %v618
      %624 = vst [vmem:[%s270] sm:$0xff] %v622
      %625 = vst [vmem:[%s270 + $0x8] sm:$0xf] %v619
      %p626 = scmp.lt.s32.totalorder %s19, 1
      %s627 = scalar_select %p626, %s19, 1
      %p628 = scmp.lt.s32.totalorder %s20, 0
      %s629 = scalar_select %p628, %s20, 0
      %s630 = smul.addr %s629, 3
      %s631 = smul.addr %s627, 3
      %s632 = sadd.s32 %s630, %s631
      %s633 = smul.addr %s632, 4
      %s634 = scalar_lea.vmem %s4, %s633
      // Predicated region
      $region37: #{resnet_forward.3} parent=35 // pred_check
        %p635 = pneg %p148
      $region38: #{resnet_forward.3} parent=35 // pred_check_branch
        %637 = sbr.rel (%p635) target = $region40
      $region39: #{resnet_forward.3} parent=35 // pred_region
        _
      $region40: #{resnet_forward.3} parent=35 // pred_fallthru
        _
    $region36: #{resnet_forward.3} parent=5 // pred_fallthru
      _
    %p638 = scmp.le.s32.totalorder 2, %s10
    // Predicated region
    $region41: #{resnet_forward.3} parent=5 // pred_check
      %p639 = pneg %p638
    $region42: #{resnet_forward.3} parent=5 // pred_check_branch
      %641 = sbr.rel (%p639) target = $region44
    $region43: #{resnet_forward.3} parent=5 // pred_region
      %s642 = ssub.s32 %s10, 2
      // Predicated region
      $region45: #{resnet_forward.3} parent=43 // pred_check
        %p643 = pneg %p154
      $region46: #{resnet_forward.3} parent=43 // pred_check_branch
        %645 = sbr.rel (%p643) target = $region48
      $region47: #{resnet_forward.3} parent=43 // pred_region
        %p646 = scmp.lt.s32.totalorder %s21, 1
        %s647 = scalar_select %p646, %s21, 1
        %p648 = scmp.lt.s32.totalorder %s22, 0
        %s649 = scalar_select %p648, %s22, 0
        %s650 = smul.addr %s649, 3
        %s651 = smul.addr %s647, 3
        %s652 = sadd.s32 %s650, %s651
        %s653 = smul.addr %s652, 4
        %s654 = scalar_lea.vmem %s4, %s653
      $region48: #{resnet_forward.3} parent=43 // pred_fallthru
        _
    $region44: #{resnet_forward.3} parent=5 // pred_fallthru
      _
  $region6: #{resnet_forward.3} parent=0 // loop_footer
    %s14 = sadd.s32 1, %s10
  $region7: #{resnet_forward.3} parent=0 // loop_footer_branch
    %9 = sbr.rel target = $region3
  $region8: #{resnet_forward.3} parent=0 // loop_exit
    _

// kernel: resnet_forward.2
$region0: #{resnet_forward.2}
  #allocation0 [shape = 'u32[]', space=smem, size = 0x4, offset = 0x4, fixed_abs, tag = 'smem constant byte address 0x4 - core index']
  #allocation1 [shape = 'u32[144,128]{1,0:T(1,128)}', space=vmem, size = 0x12000, scoped, tag = 'internal scratch']
  %s0 = inlined_call_operand.vmem [shape: f32[2,4,422], index: 0, kind: input, shape index: {}]
  %s1 = inlined_call_operand.vmem [shape: f32[4,36], index: 1, kind: input, shape index: {}]
  %s2 = inlined_call_operand.vmem [shape: f32[1,384], index: 2, kind: input, shape index: {}]
  %s3 = inlined_call_operand.vmem [shape: f32[2,4,384], index: 3, kind: output, shape index: {}]
  %s4 = sld [smem:[#allocation0]]
  $region45: #{resnet_forward.2} parent=0
    _
  %s6 = ssub.s32 1, %s4
  %s7 = scalar_select 0, %s6, %s4
  loop: start=0, step=1, limit=4
  $region2: #{resnet_forward.2} parent=0 // loop_pre_header
    _
  $region3: #{resnet_forward.2} parent=0 // loop_header
    %s9 = sphi 0, %s13
    %p10 = scmp.ge.s32.totalorder %s9, 4
    %s16 = sphi 0, %s28
    %s17 = sphi 0, %s24
    %s18 = sphi 0, %s16
    %s19 = sphi 0, %s17
    %s20 = sphi 0, %s18
    %s21 = sphi 0, %s19
    %s31 = sphi 0, %s33
    %s34 = sphi 0, %s31
    %s35 = sphi 0, %s34
    %s51 = sphi 0, %s35
    %s57 = sphi 0, %s59
    %s60 = sphi 0, %s57
    %s61 = sphi 0, %s60
    %s77 = sphi 0, %s61
    %s81 = sphi 0, %s81
    %s83 = sphi 0, %s81
    %s84 = sphi 0, %s83
    %s98 = sphi 0, %s84
    %s106 = sphi 0, %s108
    %s109 = sphi 0, %s106
    %s110 = sphi 0, %s109
    %s126 = sphi 0, %s110
  $region4: #{resnet_forward.2} parent=0 // loop_header_branch
    %12 = sbr.rel (%p10) target = $region8
  $region5: #{resnet_forward.2} parent=0 // loop_body
    %s14 = ssub.s32 %s9, 1
    %s15 = ssub.s32 %s9, 2
    %s22 = sadd.s32 1, %s17
    %p23 = scmp.ge.s32.totalorder %s22, 1
    %s24 = scalar_select %p23, 0, %s22
    %s25 = sadd.s32 1, %s16
    %s26 = scalar_select %p23, %s25, %s16
    %p27 = scmp.ge.s32.totalorder %s26, 2
    %s28 = scalar_select %p27, 0, %s26
    %s29 = ssub.s32 %s16, %s28
    %p30 = scmp.eq.s32.totalorder %s29, 0
    %s32 = sadd.s32 %s31, 1
    %s33 = scalar_select %p30, %s31, %s32
    %p36 = pneg %p30
    %p37 = scmp.eq.s32.totalorder %s9, 1
    %p38 = por %p36, %p37
    %p39 = scmp.ne.s32.totalorder %s31, %s34
    %p40 = scmp.eq.s32.totalorder %s9, 0
    %p41 = por %p39, %p40
    %p42 = scmp.ne.s32.totalorder %s31, %s34
    %p43 = scmp.eq.s32.totalorder %s14, 1
    %p44 = por %p42, %p43
    %p45 = scmp.ne.s32.totalorder %s34, %s35
    %p46 = scmp.eq.s32.totalorder %s14, 0
    %p47 = por %p45, %p46
    %p48 = scmp.ne.s32.totalorder %s34, %s35
    %p49 = scmp.eq.s32.totalorder %s15, 1
    %p50 = por %p48, %p49
    %p52 = scmp.ne.s32.totalorder %s35, %s51
    %p53 = scmp.eq.s32.totalorder %s15, 0
    %p54 = por %p52, %p53
    %s55 = ssub.s32 %s17, %s24
    %p56 = scmp.eq.s32.totalorder %s55, 0
    %s58 = sadd.s32 %s57, 1
    %s59 = scalar_select %p56, %s57, %s58
    %p62 = pneg %p56
    %p63 = scmp.eq.s32.totalorder %s9, 1
    %p64 = por %p62, %p63
    %p65 = scmp.ne.s32.totalorder %s57, %s60
    %p66 = scmp.eq.s32.totalorder %s9, 0
    %p67 = por %p65, %p66
    %p68 = scmp.ne.s32.totalorder %s57, %s60
    %p69 = scmp.eq.s32.totalorder %s14, 1
    %p70 = por %p68, %p69
    %p71 = scmp.ne.s32.totalorder %s60, %s61
    %p72 = scmp.eq.s32.totalorder %s14, 0
    %p73 = por %p71, %p72
    %p74 = scmp.ne.s32.totalorder %s60, %s61
    %p75 = scmp.eq.s32.totalorder %s15, 1
    %p76 = por %p74, %p75
    %p78 = scmp.ne.s32.totalorder %s61, %s77
    %p79 = scmp.eq.s32.totalorder %s15, 0
    %p80 = por %p78, %p79
    %s82 = sadd.s32 %s81, 1
    %p85 = scmp.eq.s32.totalorder %s9, 1
    %p86 = scmp.ne.s32.totalorder %s81, %s83
    %p87 = scmp.eq.s32.totalorder %s9, 0
    %p88 = por %p86, %p87
    %p89 = scmp.ne.s32.totalorder %s81, %s83
    %p90 = scmp.eq.s32.totalorder %s14, 1
    %p91 = por %p89, %p90
    %p92 = scmp.ne.s32.totalorder %s83, %s84
    %p93 = scmp.eq.s32.totalorder %s14, 0
    %p94 = por %p92, %p93
    %p95 = scmp.ne.s32.totalorder %s83, %s84
    %p96 = scmp.eq.s32.totalorder %s15, 1
    %p97 = por %p95, %p96
    %p99 = scmp.ne.s32.totalorder %s84, %s98
    %p100 = scmp.eq.s32.totalorder %s15, 0
    %p101 = por %p99, %p100
    %s102 = ssub.s32 %s16, %s28
    %s103 = ssub.s32 %s17, %s24
    %s104 = sor.u32 %s102, %s103
    %p105 = scmp.eq.s32.totalorder %s104, 0
    %s107 = sadd.s32 %s106, 1
    %s108 = scalar_select %p105, %s106, %s107
    %p111 = pneg %p105
    %p112 = scmp.eq.s32.totalorder %s9, 1
    %p113 = por %p111, %p112
    %p114 = scmp.ne.s32.totalorder %s106, %s109
    %p115 = scmp.eq.s32.totalorder %s9, 0
    %p116 = por %p114, %p115
    %p117 = scmp.ne.s32.totalorder %s106, %s109
    %p118 = scmp.eq.s32.totalorder %s14, 1
    %p119 = por %p117, %p118
    %p120 = scmp.ne.s32.totalorder %s109, %s110
    %p121 = scmp.eq.s32.totalorder %s14, 0
    %p122 = por %p120, %p121
    %p123 = scmp.ne.s32.totalorder %s109, %s110
    %p124 = scmp.eq.s32.totalorder %s15, 1
    %p125 = por %p123, %p124
    %p127 = scmp.ne.s32.totalorder %s110, %s126
    %p128 = scmp.eq.s32.totalorder %s15, 0
    %p129 = por %p127, %p128
    %p130 = scmp.le.s32.totalorder 1, %s9
    %p131 = scmp.lt.s32.totalorder %s9, 3
    %p132 = pnand %p130, %p131
    %p133 = pneg %p132
    // Predicated region
    $region9: #{resnet_forward.2} parent=5 // pred_check
      _
    $region10: #{resnet_forward.2} parent=5 // pred_check_branch
      %135 = sbr.rel (%p132) target = $region12
    $region11: #{resnet_forward.2} parent=5 // pred_region
      %s136 = ssub.s32 %s9, 1
      // Predicated region
      $region13: #{resnet_forward.2} parent=11 // pred_check
        %p137 = pneg %p73
      $region14: #{resnet_forward.2} parent=11 // pred_check_branch
        %139 = sbr.rel (%p137) target = $region16
      $region15: #{resnet_forward.2} parent=11 // pred_region
        %p140 = scmp.lt.s32.totalorder %s19, 0
        %s141 = scalar_select %p140, %s19, 0
        %s142 = smul.addr %s141, 4
        %s143 = scalar_lea.vmem %s1, %s142
      $region16: #{resnet_forward.2} parent=11 // pred_fallthru
        _
      // Predicated region
      $region17: #{resnet_forward.2} parent=11 // pred_check
        %p144 = pneg %p94
      $region18: #{resnet_forward.2} parent=11 // pred_check_branch
        %146 = sbr.rel (%p144) target = $region20
      $region19: #{resnet_forward.2} parent=11 // pred_region
        _
      $region20: #{resnet_forward.2} parent=11 // pred_fallthru
        _
    $region12: #{resnet_forward.2} parent=5 // pred_fallthru
      _
    %p147 = scmp.lt.s32.totalorder %s9, 2
    // Predicated region
    $region21: #{resnet_forward.2} parent=5 // pred_check
      %p148 = pneg %p147
    $region22: #{resnet_forward.2} parent=5 // pred_check_branch
      %150 = sbr.rel (%p148) target = $region24
    $region23: #{resnet_forward.2} parent=5 // pred_region
      // Predicated region
      $region25: #{resnet_forward.2} parent=23 // pred_check
        %p151 = pneg %p41
      $region26: #{resnet_forward.2} parent=23 // pred_check_branch
        %153 = sbr.rel (%p151) target = $region28
      $region27: #{resnet_forward.2} parent=23 // pred_region
        %p154 = scmp.lt.s32.totalorder %s16, 1
        %s155 = scalar_select %p154, %s16, 1
        %s156 = smul.addr %s155, 4
        %s157 = smul.addr %s156, 4
        %s158 = scalar_lea.vmem %s0, %s157
      $region28: #{resnet_forward.2} parent=23 // pred_fallthru
        _
    $region24: #{resnet_forward.2} parent=5 // pred_fallthru
      _
    %p159 = scmp.le.s32.totalorder 1, %s9
    %p160 = scmp.lt.s32.totalorder %s9, 3
    %p161 = pnand %p159, %p160
    %p162 = pneg %p161
    // Predicated region
    $region29: #{resnet_forward.2} parent=5 // pred_check
      _
    $region30: #{resnet_forward.2} parent=5 // pred_check_branch
      %164 = sbr.rel (%p161) target = $region32
    $region31: #{resnet_forward.2} parent=5 // pred_region
      %s165 = ssub.s32 %s9, 1
      %p166 = scmp.lt.s32.totalorder %s18, 1
      %s167 = scalar_select %p166, %s18, 1
      %s168 = smul.addr %s167, 4
      %s169 = smul.addr %s168, 4
      %s170 = scalar_lea.vmem %s0, %s169
      %p171 = pneg %p47
      %p172 = pneg %p44
      %p173 = scmp.lt.s32.totalorder %s19, 0
      %s174 = scalar_select %p173, %s19, 0
      %s175 = smul.addr %s174, 4
      %s176 = scalar_lea.vmem %s1, %s175
      %p177 = pneg %p73
      %p178 = pneg %p70
      %p179 = pneg %p94
      %p180 = pneg %p91
      %p181 = pneg %p122
      %p182 = pneg %p119
      %p183 = scmp.lt.s32.totalorder %s18, 1
      %s184 = scalar_select %p183, %s18, 1
      %p185 = scmp.lt.s32.totalorder %s19, 0
      %s186 = scalar_select %p185, %s19, 0
      %s187 = smul.addr %s186, 3
      %s188 = smul.addr %s184, 3
      %s189 = sadd.s32 %s187, %s188
      %s190 = smul.addr %s189, 4
      %s191 = scalar_lea.vmem %s3, %s190
      %p192 = scmp.lt.s32.totalorder %s18, 1
      %s193 = scalar_select %p192, %s18, 1
      %s194 = smul.addr %s193, 4
      %s195 = smul.addr %s194, 4
      %s196 = scalar_lea.vmem %s0, %s195
      %p197 = scmp.lt.s32.totalorder %s19, 0
      %s198 = scalar_select %p197, %s19, 0
      %s199 = smul.addr %s198, 4
      %s200 = scalar_lea.vmem %s1, %s199
      %p201 = scmp.lt.s32.totalorder %s18, 1
      %s202 = scalar_select %p201, %s18, 1
      %p203 = scmp.lt.s32.totalorder %s19, 0
      %s204 = scalar_select %p203, %s19, 0
      %s205 = smul.addr %s204, 3
      %s206 = smul.addr %s202, 3
      %s207 = sadd.s32 %s205, %s206
      %s208 = smul.addr %s207, 4
      %s209 = scalar_lea.vmem %s3, %s208
      %v210 = vld [vmem:[%s196] sm:$0xff]
      %v211 = vld [vmem:[%s196 + $0x8] sm:$0xff]
      %v214 = vcombine.high %v210, %v210
      %v216 = vcombine.low %v210, %v210
      %v217 = vcombine.low %v211, %v211
      %218 = vrot.lane.b32.xlu0 %v216, 127
      %v219 = vpop.permute.xlu0 %218
      %220 = vrot.lane.b32.xlu0 %v210, 127
      %v221 = vpop.permute.xlu0 %220
      %222 = vrot.lane.b32.xlu0 %v217, 127
      %v223 = vpop.permute.xlu0 %222
      %224 = vrot.lane.b32.xlu0 %v211, 127
      %v225 = vpop.permute.xlu0 %224
      %vm226 = vcmask 1039360
      %v227 = vsel %vm226, %v219, %v221
      %v228 = vsel %vm226, %v221, %v223
      %v229 = vsel %vm226, %v223, %v225
      %v233 = vcombine.high %v211, %v211
      %234 = vrot.lane.b32.xlu0 %v210, 126
      %v235 = vpop.permute.xlu0 %234
      %236 = vrot.lane.b32.xlu0 %v214, 126
      %v237 = vpop.permute.xlu0 %236
      %238 = vrot.lane.b32.xlu0 %v211, 126
      %v239 = vpop.permute.xlu0 %238
      %240 = vrot.lane.b32.xlu0 %v233, 126
      %v241 = vpop.permute.xlu0 %240
      %vm242 = vcmask 1031168
      %v243 = vsel %vm242, %v235, %v237
      %v244 = vsel %vm242, %v237, %v239
      %v245 = vsel %vm242, %v239, %v241
      %249 = vrot.lane.b32.xlu0 %v216, 110
      %v250 = vpop.permute.xlu0 %249
      %251 = vrot.lane.b32.xlu0 %v210, 110
      %v252 = vpop.permute.xlu0 %251
      %253 = vrot.lane.b32.xlu0 %v217, 110
      %v254 = vpop.permute.xlu0 %253
      %255 = vrot.lane.b32.xlu0 %v211, 110
      %v256 = vpop.permute.xlu0 %255
      %vm257 = vcmask 900096
      %v258 = vsel %vm257, %v250, %v252
      %v259 = vsel %vm257, %v252, %v254
      %v260 = vsel %vm257, %v254, %v256
      %264 = vrot.lane.b32.xlu0 %v210, 109
      %v265 = vpop.permute.xlu0 %264
      %266 = vrot.lane.b32.xlu0 %v214, 109
      %v267 = vpop.permute.xlu0 %266
      %268 = vrot.lane.b32.xlu0 %v211, 109
      %v269 = vpop.permute.xlu0 %268
      %270 = vrot.lane.b32.xlu0 %v233, 109
      %v271 = vpop.permute.xlu0 %270
      %vm272 = vcmask 891904
      %v273 = vsel %vm272, %v265, %v267
      %v274 = vsel %vm272, %v267, %v269
      %v275 = vsel %vm272, %v269, %v271
      %279 = vrot.lane.b32.xlu0 %v216, 108
      %v280 = vpop.permute.xlu0 %279
      %281 = vrot.lane.b32.xlu0 %v210, 108
      %v282 = vpop.permute.xlu0 %281
      %283 = vrot.lane.b32.xlu0 %v217, 108
      %v284 = vpop.permute.xlu0 %283
      %285 = vrot.lane.b32.xlu0 %v211, 108
      %v286 = vpop.permute.xlu0 %285
      %vm287 = vcmask 883712
      %v288 = vsel %vm287, %v280, %v282
      %v289 = vsel %vm287, %v282, %v284
      %v290 = vsel %vm287, %v284, %v286
      %294 = vrot.lane.b32.xlu0 %v210, 92
      %v295 = vpop.permute.xlu0 %294
      %296 = vrot.lane.b32.xlu0 %v214, 92
      %v297 = vpop.permute.xlu0 %296
      %298 = vrot.lane.b32.xlu0 %v211, 92
      %v299 = vpop.permute.xlu0 %298
      %300 = vrot.lane.b32.xlu0 %v233, 92
      %v301 = vpop.permute.xlu0 %300
      %vm302 = vcmask 752640
      %v303 = vsel %vm302, %v295, %v297
      %v304 = vsel %vm302, %v297, %v299
      %v305 = vsel %vm302, %v299, %v301
      %309 = vrot.lane.b32.xlu0 %v216, 91
      %v310 = vpop.permute.xlu0 %309
      %311 = vrot.lane.b32.xlu0 %v210, 91
      %v312 = vpop.permute.xlu0 %311
      %313 = vrot.lane.b32.xlu0 %v217, 91
      %v314 = vpop.permute.xlu0 %313
      %315 = vrot.lane.b32.xlu0 %v211, 91
      %v316 = vpop.permute.xlu0 %315
      %vm317 = vcmask 744448
      %v318 = vsel %vm317, %v310, %v312
      %v319 = vsel %vm317, %v312, %v314
      %v320 = vsel %vm317, %v314, %v316
      %324 = vrot.lane.b32.xlu0 %v210, 90
      %v325 = vpop.permute.xlu0 %324
      %326 = vrot.lane.b32.xlu0 %v214, 90
      %v327 = vpop.permute.xlu0 %326
      %328 = vrot.lane.b32.xlu0 %v211, 90
      %v329 = vpop.permute.xlu0 %328
      %330 = vrot.lane.b32.xlu0 %v233, 90
      %v331 = vpop.permute.xlu0 %330
      %vm332 = vcmask 736256
      %v333 = vsel %vm332, %v325, %v327
      %v334 = vsel %vm332, %v327, %v329
      %v335 = vsel %vm332, %v329, %v331
      %vm336 = vcmask 1043456
      %v337 = vsel %vm336, %v210, %v227
      %v338 = vsel %vm336, %v214, %v228
      %v339 = vsel %vm336, %v211, %v229
      %v340 = vsel %vm336, %v243, %v258
      %v341 = vsel %vm336, %v244, %v259
      %v342 = vsel %vm336, %v245, %v260
      %v343 = vsel %vm336, %v273, %v288
      %v344 = vsel %vm336, %v274, %v289
      %v345 = vsel %vm336, %v275, %v290
      %v346 = vsel %vm336, %v303, %v318
      %v347 = vsel %vm336, %v304, %v319
      %v348 = vsel %vm336, %v305, %v320
      %v349 = vld [vmem:[%s200] sm:$0xf]
      %vm350 = vcmask 293888
      %v352 = vsel %vm350, %v349, 0
      %v354 = vsel %vm336, %v333, 0
      %v356 = vsel %vm336, %v334, 0
      %v358 = vsel %vm336, %v335, 0
      %360 = vmatprep.subr.mxu0 %v338
      %361 = vmatpush1.msra.mxu0 %v337
      %362 = vmatprep.subr.mxu0 %v341
      %363 = vmatpush1.msra.mxu0 %v340
      %364 = vmatprep.subr.mxu0 %v344
      %365 = vmatpush1.msra.mxu0 %v343
      %366 = vmatprep.subr.mxu0 %v347
      %367 = vmatpush1.msra.mxu0 %v346
      %368 = vmatprep.subr.mxu0 %v356
      %369 = vmatpush1.msra.mxu0 %v354
      %370 = vmatprep.subr.mxu0 0.0
      %371 = vmatpush1.msra.mxu0 0.0
      %372 = vmatprep.subr.mxu0 0.0
      %373 = vmatpush1.msra.mxu0 0.0
      %374 = vmatprep.subr.mxu0 0.0
      %375 = vmatpush1.msra.mxu0 0.0
      %376 = vmatprep.subr.mxu0 0.0
      %377 = vmatpush1.msra.mxu0 0.0
      %378 = vmatprep.subr.mxu0 0.0
      %379 = vmatpush1.msra.mxu0 0.0
      %380 = vmatprep.subr.mxu0 0.0
      %381 = vmatpush1.msra.mxu0 0.0
      %382 = vmatprep.subr.mxu0 0.0
      %383 = vmatpush1.msra.mxu0 0.0
      %384 = vmatprep.subr.mxu0 0.0
      %385 = vmatpush1.msra.mxu0 0.0
      %386 = vmatprep.subr.mxu0 0.0
      %387 = vmatpush1.msra.mxu0 0.0
      %388 = vmatprep.subr.mxu0 0.0
      %389 = vmatpush1.msra.mxu0 0.0
      %390 = vmatprep.subr.mxu0 0.0
      %391 = vmatpush1.msra.mxu0 0.0
      %392 = vmatprep.subr.mxu0 0.0
      %393 = vmatpush1.msra.mxu0 0.0
      %394 = vmatprep.subr.mxu0 0.0
      %395 = vmatpush1.msra.mxu0 0.0
      %396 = vmatprep.subr.mxu0 0.0
      %397 = vmatpush1.msra.mxu0 0.0
      %398 = vmatprep.subr.mxu0 0.0
      %399 = vmatpush1.msra.mxu0 0.0
      %400 = vmatprep.subr.mxu0 0.0
      %401 = vmatpush1.msra.mxu0 0.0
      %402 = vmatprep.subr.mxu0 0.0
      %403 = vmatpush1.msra.mxu0 0.0
      %404 = vmatprep.subr.mxu0 0.0
      %405 = vmatpush1.msra.mxu0 0.0
      %406 = vmatprep.subr.mxu0 0.0
      %407 = vmatpush1.msra.mxu0 0.0
      %408 = vmatprep.subr.mxu0 0.0
      %409 = vmatpush1.msra.mxu0 0.0
      %410 = vmatprep.subr.mxu0 0.0
      %411 = vmatpush1.msra.mxu0 0.0
      %412 = vmatprep.subr.mxu0 0.0
      %413 = vmatpush1.msra.mxu0 0.0
      %414 = vmatprep.subr.mxu0 0.0
      %415 = vmatpush1.msra.mxu0 0.0
      %416 = vmatprep.subr.mxu0 0.0
      %417 = vmatpush1.msra.mxu0 0.0
      %418 = vmatprep.subr.mxu0 0.0
      %419 = vmatpush1.msra.mxu0 0.0
      %420 = vmatprep.subr.mxu0 0.0
      %421 = vmatpush1.msra.mxu0 0.0
      %422 = vmatprep.subr.mxu0 0.0
      %423 = vmatpush1.msra.mxu0 0.0
      %424 = vmatprep.mubr.f32.mxu0 0.0
      %425 = vmatmul.mubr.f32.gmra.mrb[0].mxu0 %v352
      %v426 = vpop.f32.mrb[0].mxu0
      %v427 = vadd.f32 0.0, %v426
      %v428 = vpop.f32.mrb[0].mxu0
      %v429 = vadd.f32 0.0, %v428
      %430 = vdwg.mxu0
      %431 = vmatprep.subr.mxu0 0.0
      %432 = vmatpush1.msra.mxu0 %v339
      %433 = vmatprep.subr.mxu0 0.0
      %434 = vmatpush1.msra.mxu0 %v342
      %435 = vmatprep.subr.mxu0 0.0
      %436 = vmatpush1.msra.mxu0 %v345
      %437 = vmatprep.subr.mxu0 0.0
      %438 = vmatpush1.msra.mxu0 %v348
      %439 = vmatprep.subr.mxu0 0.0
      %440 = vmatpush1.msra.mxu0 %v358
      %441 = vmatprep.subr.mxu0 0.0
      %442 = vmatpush1.msra.mxu0 0.0
      %443 = vmatprep.subr.mxu0 0.0
      %444 = vmatpush1.msra.mxu0 0.0
      %445 = vmatprep.subr.mxu0 0.0
      %446 = vmatpush1.msra.mxu0 0.0
      %447 = vmatprep.subr.mxu0 0.0
      %448 = vmatpush1.msra.mxu0 0.0
      %449 = vmatprep.subr.mxu0 0.0
      %450 = vmatpush1.msra.mxu0 0.0
      %451 = vmatprep.subr.mxu0 0.0
      %452 = vmatpush1.msra.mxu0 0.0
      %453 = vmatprep.subr.mxu0 0.0
      %454 = vmatpush1.msra.mxu0 0.0
      %455 = vmatprep.subr.mxu0 0.0
      %456 = vmatpush1.msra.mxu0 0.0
      %457 = vmatprep.subr.mxu0 0.0
      %458 = vmatpush1.msra.mxu0 0.0
      %459 = vmatprep.subr.mxu0 0.0
      %460 = vmatpush1.msra.mxu0 0.0
      %461 = vmatprep.subr.mxu0 0.0
      %462 = vmatpush1.msra.mxu0 0.0
      %463 = vmatprep.subr.mxu0 0.0
      %464 = vmatpush1.msra.mxu0 0.0
      %465 = vmatprep.subr.mxu0 0.0
      %466 = vmatpush1.msra.mxu0 0.0
      %467 = vmatprep.subr.mxu0 0.0
      %468 = vmatpush1.msra.mxu0 0.0
      %469 = vmatprep.subr.mxu0 0.0
      %470 = vmatpush1.msra.mxu0 0.0
      %471 = vmatprep.subr.mxu0 0.0
      %472 = vmatpush1.msra.mxu0 0.0
      %473 = vmatprep.subr.mxu0 0.0
      %474 = vmatpush1.msra.mxu0 0.0
      %475 = vmatprep.subr.mxu0 0.0
      %476 = vmatpush1.msra.mxu0 0.0
      %477 = vmatprep.subr.mxu0 0.0
      %478 = vmatpush1.msra.mxu0 0.0
      %479 = vmatprep.subr.mxu0 0.0
      %480 = vmatpush1.msra.mxu0 0.0
      %481 = vmatprep.subr.mxu0 0.0
      %482 = vmatpush1.msra.mxu0 0.0
      %483 = vmatprep.subr.mxu0 0.0
      %484 = vmatpush1.msra.mxu0 0.0
      %485 = vmatprep.subr.mxu0 0.0
      %486 = vmatpush1.msra.mxu0 0.0
      %487 = vmatprep.subr.mxu0 0.0
      %488 = vmatpush1.msra.mxu0 0.0
      %489 = vmatprep.subr.mxu0 0.0
      %490 = vmatpush1.msra.mxu0 0.0
      %491 = vmatprep.subr.mxu0 0.0
      %492 = vmatpush1.msra.mxu0 0.0
      %493 = vmatprep.subr.mxu0 0.0
      %494 = vmatpush1.msra.mxu0 0.0
      %495 = vmatprep.mubr.f32.mxu0 0.0
      %496 = vmatmul.mubr.f32.gmra.mrb[0].mxu0 %v352
      %v497 = vpop.f32.mrb[0].mxu0
      %v498 = vadd.f32 0.0, %v497
      %v499 = vpop.f32.mrb[0].mxu0
      %500 = vdwg.mxu0
      %v501 = vld [vmem:[%s2] sm:$0x7]
      %v503 = vlaneseq
      %v504 = vshrl.u32 %v503, 7
      %v505 = vsub.s32 0, %v504
      %v506 = vrot.slane %v501, %v505
      %v507 = vlaneseq
      %v508 = vshrl.u32 %v507, 7
      %v509 = vsub.s32 1, %v508
      %v510 = vrot.slane %v501, %v509
      %v511 = vlaneseq
      %v512 = vshrl.u32 %v511, 7
      %v513 = vsub.s32 2, %v512
      %v514 = vrot.slane %v501, %v513
      %v518 = vmul.f32 %v427, %v506
      %v519 = vmul.f32 %v429, %v510
      %v520 = vmul.f32 %v498, %v514
      %v521 = vsel %vm336, %v518, 0.0
      %v522 = vsel %vm336, %v519, 0.0
      %v523 = vadd.f32 %v521, %v522
      %v524 = vsel %vm336, %v520, 0.0
      %v525 = vadd.f32 %v523, %v524
      %526 = vadd.xlane.f32.xlu0 %v525
      %v527 = vpop.xlane.xlu0 %526
      %v528 = vmul.f32 %v527, 0.00390625
      %v529 = vsub.f32 %v427, %v528
      %v530 = vsub.f32 %v429, %v528
      %v531 = vsub.f32 %v498, %v528
      %v532 = vmul.f32 %v529, %v506
      %v533 = vmul.f32 %v530, %v510
      %v534 = vmul.f32 %v531, %v514
      %v535 = vmul.f32 %v532, %v532
      %v536 = vmul.f32 %v533, %v533
      %v537 = vmul.f32 %v534, %v534
      %v538 = vsel %vm336, %v535, 0.0
      %v539 = vsel %vm336, %v536, 0.0
      %v540 = vadd.f32 %v538, %v539
      %v541 = vsel %vm336, %v537, 0.0
      %v542 = vadd.f32 %v540, %v541
      %543 = vadd.xlane.f32.xlu0 %v542
      %v544 = vpop.xlane.xlu0 %543
      %v545 = vmul.f32 %v544, 0.00390625
      %v546 = vadd.f32 %v545, 1e-05
      %v547 = vrsqrt.pop %v546
      %v548 = vmul.f32 %v529, %v547
      %v549 = vmul.f32 %v530, %v547
      %v550 = vmul.f32 %v531, %v547
      %v551 = vmax.f32 %v548, 0.0
      %v552 = vmax.f32 %v549, 0.0
      %v553 = vmax.f32 %v550, 0.0
      %v556 = vcombine.low %v551, %v552
      %558 = vst [vmem:[%s209] sm:$0xff] %v556
      %559 = vst [vmem:[%s209 + $0x8] sm:$0xf] %v553
      %p560 = scmp.lt.s32.totalorder %s18, 1
      %s561 = scalar_select %p560, %s18, 1
      %p562 = scmp.lt.s32.totalorder %s19, 0
      %s563 = scalar_select %p562, %s19, 0
      %s564 = smul.addr %s563, 3
      %s565 = smul.addr %s561, 3
      %s566 = sadd.s32 %s564, %s565
      %s567 = smul.addr %s566, 4
      %s568 = scalar_lea.vmem %s3, %s567
      // Predicated region
      $region33: #{resnet_forward.2} parent=31 // pred_check
        %p569 = pneg %p119
      $region34: #{resnet_forward.2} parent=31 // pred_check_branch
        %571 = sbr.rel (%p569) target = $region36
      $region35: #{resnet_forward.2} parent=31 // pred_region
        _
      $region36: #{resnet_forward.2} parent=31 // pred_fallthru
        _
    $region32: #{resnet_forward.2} parent=5 // pred_fallthru
      _
    %p572 = scmp.le.s32.totalorder 2, %s9
    // Predicated region
    $region37: #{resnet_forward.2} parent=5 // pred_check
      %p573 = pneg %p572
    $region38: #{resnet_forward.2} parent=5 // pred_check_branch
      %575 = sbr.rel (%p573) target = $region40
    $region39: #{resnet_forward.2} parent=5 // pred_region
      %s576 = ssub.s32 %s9, 2
      // Predicated region
      $region41: #{resnet_forward.2} parent=39 // pred_check
        %p577 = pneg %p125
      $region42: #{resnet_forward.2} parent=39 // pred_check_branch
        %579 = sbr.rel (%p577) target = $region44
      $region43: #{resnet_forward.2} parent=39 // pred_region
        %p580 = scmp.lt.s32.totalorder %s20, 1
        %s581 = scalar_select %p580, %s20, 1
        %p582 = scmp.lt.s32.totalorder %s21, 0
        %s583 = scalar_select %p582, %s21, 0
        %s584 = smul.addr %s583, 3
        %s585 = smul.addr %s581, 3
        %s586 = sadd.s32 %s584, %s585
        %s587 = smul.addr %s586, 4
        %s588 = scalar_lea.vmem %s3, %s587
      $region44: #{resnet_forward.2} parent=39 // pred_fallthru
        _
    $region40: #{resnet_forward.2} parent=5 // pred_fallthru
      _
  $region6: #{resnet_forward.2} parent=0 // loop_footer
    %s13 = sadd.s32 1, %s9
  $region7: #{resnet_forward.2} parent=0 // loop_footer_branch
    %8 = sbr.rel target = $region3
  $region8: #{resnet_forward.2} parent=0 // loop_exit
    _

</llo_original>
